<compile_context>
chip_gen: v6e
topology: v6e:2x2x1
jax: 0.10.0
libtpu: 0.0.40
codegen_flags: <defaults>
</compile_context>

<pallas_src>
import functools

import jax
import jax.numpy as jnp
from jax.experimental import pallas as pl
from jax.experimental.pallas import tpu as pltpu


def _round_up(x, m):
    return ((x + m - 1) // m) * m


def _pad_to(a, shape):
    """Zero-pad array `a` up to `shape` (trailing padding only)."""
    pads = [(0, t - s) for s, t in zip(a.shape, shape)]
    return jnp.pad(a, pads)


def _pick_batch_tile(batch, d_in, out_dim, *, max_tile=512,
                     stream_budget_bytes=8 << 20):
    """Largest batch tile (multiple of 128) whose double-buffered x/out streams
    stay well under every generation's scoped-VMEM default (v7x is tightest)."""
    tb = min(_round_up(max(batch, 1), 128), _round_up(max(max_tile, 128), 128))
    while tb > 128:
        # bf16 x stream + f32 out stream, both double-buffered.
        stream = 2 * tb * d_in * 2 + 2 * tb * out_dim * 4
        if stream <= stream_budget_bytes:
            break
        tb -= 128
    return tb


def _mlp_kernel(num_hidden_repeats, x_ref, w0_ref, b0_ref, w1_ref, b1_ref,
                wo_ref, bo_ref, o_ref):
    """ctPred forward for one batch tile, fused in VMEM.

    x_ref  : (TB, D_in) bf16     w0_ref : (D_in, Hp) bf16   b0_ref : (1, Hp) f32
    w1_ref : (Hp, Hp)   bf16     b1_ref : (1, Hp)    f32    (shared hidden layer,
                                                             applied num_hidden_repeats x)
    wo_ref : (1, Hp)    f32      bo_ref : (1,) f32 (SMEM)   o_ref  : (TB, 1) f32
    """
    tb = x_ref.shape[0]
    hp = w0_ref.shape[1]

    # Input layer: MXU matmul (bf16 operands, f32 accumulation) -> bias -> ReLU.
    # Dropout is identity in inference mode.
    h = jnp.dot(x_ref[...], w0_ref[...], preferred_element_type=jnp.float32)
    h = jnp.maximum(h + b0_ref[...], 0.0)

    # Hidden layers: the SAME (w1, b1) applied repeatedly (weight sharing in the
    # PyTorch module).  Bias broadcast hoisted out of the unrolled loop.
    w1 = w1_ref[...]
    b1 = jnp.broadcast_to(b1_ref[...], (tb, hp))
    for _ in range(num_hidden_repeats):
        h = jnp.dot(h.astype(w1.dtype), w1, preferred_element_type=jnp.float32)
        h = jnp.maximum(h + b1, 0.0)

    # Output layer (output_dim == 1): VPU multiply + lane reduce frees the MXU
    # from a 1-column matmul; bias read as a scalar from SMEM.
    out = jnp.sum(h * wo_ref[...], axis=-1, keepdims=True) + bo_ref[0]
    o_ref[...] = out.astype(o_ref.dtype)


def ctpred_forward(x, params, *, num_layers=4, max_batch_tile=512):
    """Run the ctPred forward pass with a single batch-gridded pallas_call.

    x: (B, input_dim) float32
    params: dict with w0 (D_in,H), b0 (1,H), w1 (H,H), b1 (1,H), wo (H,1), bo (1,1)
    """
    B, d_in = x.shape
    H = params["w0"].shape[1]
    out_dim = params["wo"].shape[1]
    if out_dim != 1:
        # TODO(synk): output_dim > 1 would use an (H, out_dim) MXU matmul + VMEM bias.
        raise NotImplementedError("ctPred Pallas kernel is specialised for output_dim == 1")
    num_hidden_repeats = num_layers - 1

    # Pad the hidden width to a full lane tile (128); padded columns stay 0.
    hp = _round_up(max(H, 1), 128)

    # Batch tiling: TB rows per grid step; pad the batch with zero rows.
    tb = _pick_batch_tile(B, d_in, out_dim, max_tile=max_batch_tile)
    b_pad = _round_up(B, tb)
    grid = (b_pad // tb,)

    # bf16 matmul operands (f32 accumulation in-kernel); biases and the 1-wide
    # output weights stay f32 (they feed VPU adds / multiplies).
    xp = x if b_pad == B else jnp.pad(x, ((0, b_pad - B), (0, 0)))
    xp = xp.astype(jnp.bfloat16)
    w0 = _pad_to(params["w0"], (d_in, hp)).astype(jnp.bfloat16)
    b0 = _pad_to(params["b0"], (1, hp)).astype(jnp.float32)
    w1 = _pad_to(params["w1"], (hp, hp)).astype(jnp.bfloat16)
    b1 = _pad_to(params["b1"], (1, hp)).astype(jnp.float32)
    wo = _pad_to(params["wo"].T, (out_dim, hp)).astype(jnp.float32)   # (1, Hp) row
    bo = params["bo"].reshape((out_dim,)).astype(jnp.float32)         # SMEM scalar

    kernel = functools.partial(_mlp_kernel, num_hidden_repeats)
    resident = lambda shape: pl.BlockSpec(shape, lambda i: (0, 0))    # stays in VMEM

    out = pl.pallas_call(
        kernel,
        out_shape=jax.ShapeDtypeStruct((b_pad, out_dim), jnp.float32),
        grid=grid,
        in_specs=[
            pl.BlockSpec((tb, d_in), lambda i: (i, 0)),         # x: streamed over batch
            resident((d_in, hp)),                               # w0
            resident((1, hp)),                                  # b0
            resident((hp, hp)),                                 # w1 (shared hidden layer)
            resident((1, hp)),                                  # b1
            resident((out_dim, hp)),                            # wo row
            pl.BlockSpec(memory_space=pltpu.MemorySpace.SMEM),  # bo scalar
        ],
        out_specs=pl.BlockSpec((tb, out_dim), lambda i: (i, 0)),
        compiler_params=pltpu.CompilerParams(
            dimension_semantics=("parallel",),                  # 2-TC sharding on v7x
        ),
    )(xp, w0, b0, w1, b1, wo, bo)
    return out[:B]


def init_params(key, input_dim, hidden_dim, output_dim):
    """Deterministic synthetic parameters (uniform, roughly torch Linear scale)."""
    ks = jax.random.split(key, 6)

    def lin(kw, kb, fan_in, fan_out):
        bound = 1.0 / jnp.sqrt(fan_in)
        w = jax.random.uniform(kw, (fan_in, fan_out), jnp.float32, -bound, bound)
        b = jax.random.uniform(kb, (1, fan_out), jnp.float32, -bound, bound)
        return w, b

    w0, b0 = lin(ks[0], ks[1], input_dim, hidden_dim)
    w1, b1 = lin(ks[2], ks[3], hidden_dim, hidden_dim)
    wo, bo = lin(ks[4], ks[5], hidden_dim, output_dim)
    return {"w0": w0, "b0": b0, "w1": w1, "b1": b1, "wo": wo, "bo": bo}


def reference_forward(x, params, *, num_layers=4):
    """Pure-JAX f32 reference matching the PyTorch module semantics (inference)."""
    h = jnp.maximum(x @ params["w0"] + params["b0"], 0.0)
    for _ in range(num_layers - 1):
        h = jnp.maximum(h @ params["w1"] + params["b1"], 0.0)
    return h @ params["wo"] + params["bo"]


if __name__ == "__main__":
    # Small shapes consistent with the module (input_dim/hidden_dim are kwargs;
    # module defaults are input_dim=5313, hidden_dim=64, output_dim=1, num_layers=4).
    batch = 8
    input_dim = 256
    hidden_dim = 64
    output_dim = 1
    num_layers = 4

    key = jax.random.PRNGKey(0)
    kx, kp = jax.random.split(key)
    x = jax.random.normal(kx, (batch, input_dim), dtype=jnp.float32)
    params = init_params(kp, input_dim, hidden_dim, output_dim)

    out = ctpred_forward(x, params, num_layers=num_layers)
    out = jax.block_until_ready(out)

    ref = reference_forward(x, params, num_layers=num_layers)
    assert out.shape == (batch, output_dim), out.shape
    # bf16 MXU operands with f32 accumulation -> loosened tolerance vs pure-f32 reference.
    assert jnp.allclose(out, ref, atol=1e-2, rtol=1e-2), (out, ref)

    print("KERNEL_OK")
</pallas_src>

<mosaic_0001>
module attributes {stable_mosaic.version = 11 : i64} {
  func.func @_mlp_kernel(%arg0: i32, %arg1: memref<128x256xbf16, #tpu.memory_space<vmem>>, %arg2: memref<256x128xbf16, #tpu.memory_space<vmem>>, %arg3: memref<1x128xf32, #tpu.memory_space<vmem>>, %arg4: memref<128x128xbf16, #tpu.memory_space<vmem>>, %arg5: memref<1x128xf32, #tpu.memory_space<vmem>>, %arg6: memref<1x128xf32, #tpu.memory_space<vmem>>, %arg7: memref<1xf32, #tpu.memory_space<smem>>, %arg8: memref<128x1xf32, #tpu.memory_space<vmem>>) attributes {dimension_semantics = [#tpu.dimension_semantics<parallel>], iteration_bounds = array<i64: 1>, scalar_prefetch = 0 : i64, scratch_operands = 0 : i64, tpu.core_type = #tpu.core_type<tc>, window_params = [{transform_indices = @transform_0, window_bounds = array<i64: 128, 256>}, {pipeline_mode = #tpu.pipeline_mode<synchronous>, transform_indices = @transform_1, window_bounds = array<i64: 256, 128>}, {pipeline_mode = #tpu.pipeline_mode<synchronous>, transform_indices = @transform_2, window_bounds = array<i64: 1, 128>}, {pipeline_mode = #tpu.pipeline_mode<synchronous>, transform_indices = @transform_3, window_bounds = array<i64: 128, 128>}, {pipeline_mode = #tpu.pipeline_mode<synchronous>, transform_indices = @transform_4, window_bounds = array<i64: 1, 128>}, {pipeline_mode = #tpu.pipeline_mode<synchronous>, transform_indices = @transform_5, window_bounds = array<i64: 1, 128>}, {transform_indices = @transform_6, window_bounds = array<i64: 1>}, {transform_indices = @transform_7, window_bounds = array<i64: 128, 1>}]} {
    %c0 = arith.constant 0 : index
    %c0_0 = arith.constant 0 : index
    %0 = vector.load %arg1[%c0, %c0_0] : memref<128x256xbf16, #tpu.memory_space<vmem>>, vector<128x256xbf16>
    %c0_1 = arith.constant 0 : index
    %c0_2 = arith.constant 0 : index
    %1 = vector.load %arg2[%c0_1, %c0_2] : memref<256x128xbf16, #tpu.memory_space<vmem>>, vector<256x128xbf16>
    %cst = arith.constant dense<0.000000e+00> : vector<128x128xf32>
    %2 = tpu.matmul %0, %1, %cst {dimension_numbers = #tpu.dot_dimension_numbers<[1], [0], [0], [1], [0, 0, 1, 1], [], []>} : vector<128x256xbf16>, vector<256x128xbf16>, vector<128x128xf32> -> vector<128x128xf32>
    %c0_3 = arith.constant 0 : index
    %c0_4 = arith.constant 0 : index
    %3 = vector.load %arg3[%c0_3, %c0_4] : memref<1x128xf32, #tpu.memory_space<vmem>>, vector<1x128xf32>
    %4 = vector.broadcast %3 : vector<1x128xf32> to vector<128x128xf32>
    %5 = arith.addf %2, %4 : vector<128x128xf32>
    %cst_5 = arith.constant 0.000000e+00 : f32
    %6 = vector.broadcast %cst_5 : f32 to vector<128x128xf32>
    %7 = arith.maximumf %5, %6 : vector<128x128xf32>
    %c0_6 = arith.constant 0 : index
    %c0_7 = arith.constant 0 : index
    %8 = vector.load %arg4[%c0_6, %c0_7] : memref<128x128xbf16, #tpu.memory_space<vmem>>, vector<128x128xbf16>
    %c0_8 = arith.constant 0 : index
    %c0_9 = arith.constant 0 : index
    %9 = vector.load %arg5[%c0_8, %c0_9] : memref<1x128xf32, #tpu.memory_space<vmem>>, vector<1x128xf32>
    %10 = vector.shape_cast %9 : vector<1x128xf32> to vector<1x128xf32>
    %11 = vector.broadcast %10 : vector<1x128xf32> to vector<128x128xf32>
    %12 = arith.truncf %7 : vector<128x128xf32> to vector<128x128xbf16>
    %cst_10 = arith.constant dense<0.000000e+00> : vector<128x128xf32>
    %13 = tpu.matmul %12, %8, %cst_10 {dimension_numbers = #tpu.dot_dimension_numbers<[1], [0], [0], [1], [0, 0, 1, 1], [], []>} : vector<128x128xbf16>, vector<128x128xbf16>, vector<128x128xf32> -> vector<128x128xf32>
    %14 = arith.addf %13, %11 : vector<128x128xf32>
    %cst_11 = arith.constant 0.000000e+00 : f32
    %15 = vector.broadcast %cst_11 : f32 to vector<128x128xf32>
    %16 = arith.maximumf %14, %15 : vector<128x128xf32>
    %17 = arith.truncf %16 : vector<128x128xf32> to vector<128x128xbf16>
    %cst_12 = arith.constant dense<0.000000e+00> : vector<128x128xf32>
    %18 = tpu.matmul %17, %8, %cst_12 {dimension_numbers = #tpu.dot_dimension_numbers<[1], [0], [0], [1], [0, 0, 1, 1], [], []>} : vector<128x128xbf16>, vector<128x128xbf16>, vector<128x128xf32> -> vector<128x128xf32>
    %19 = arith.addf %18, %11 : vector<128x128xf32>
    %cst_13 = arith.constant 0.000000e+00 : f32
    %20 = vector.broadcast %cst_13 : f32 to vector<128x128xf32>
    %21 = arith.maximumf %19, %20 : vector<128x128xf32>
    %22 = arith.truncf %21 : vector<128x128xf32> to vector<128x128xbf16>
    %cst_14 = arith.constant dense<0.000000e+00> : vector<128x128xf32>
    %23 = tpu.matmul %22, %8, %cst_14 {dimension_numbers = #tpu.dot_dimension_numbers<[1], [0], [0], [1], [0, 0, 1, 1], [], []>} : vector<128x128xbf16>, vector<128x128xbf16>, vector<128x128xf32> -> vector<128x128xf32>
    %24 = arith.addf %23, %11 : vector<128x128xf32>
    %cst_15 = arith.constant 0.000000e+00 : f32
    %25 = vector.broadcast %cst_15 : f32 to vector<128x128xf32>
    %26 = arith.maximumf %24, %25 : vector<128x128xf32>
    %c0_16 = arith.constant 0 : index
    %c0_17 = arith.constant 0 : index
    %27 = vector.load %arg6[%c0_16, %c0_17] : memref<1x128xf32, #tpu.memory_space<vmem>>, vector<1x128xf32>
    %28 = vector.broadcast %27 : vector<1x128xf32> to vector<128x128xf32>
    %29 = arith.mulf %26, %28 : vector<128x128xf32>
    %cst_18 = arith.constant dense<0.000000e+00> : vector<128xf32>
    %30 = vector.multi_reduction <add>, %29, %cst_18 [1] : vector<128x128xf32> to vector<128xf32>
    %31 = vector.shape_cast %30 : vector<128xf32> to vector<128x1xf32>
    %c0_19 = arith.constant 0 : index
    %32 = memref.load %arg7[%c0_19] : memref<1xf32, #tpu.memory_space<smem>>
    %33 = vector.broadcast %32 : f32 to vector<128x1xf32>
    %34 = arith.addf %31, %33 : vector<128x1xf32>
    %c0_20 = arith.constant 0 : index
    %c0_21 = arith.constant 0 : index
    %35 = vector.load %arg8[%c0_20, %c0_21] : memref<128x1xf32, #tpu.memory_space<vmem>>, vector<128x1xf32>
    tpu.vector_store %arg8[%c0_20, %c0_21], %34 {strides = array<i32>} : memref<128x1xf32, #tpu.memory_space<vmem>>, vector<128x1xf32>,
    return
  }
  func.func @transform_0(%arg0: i32) -> (i32, i32) {
    %c0_i32 = arith.constant 0 : i32
    %c0_i32_0 = arith.constant 0 : i32
    return %arg0, %c0_i32 : i32, i32
  }
  func.func @transform_1(%arg0: i32) -> (i32, i32) {
    %c0_i32 = arith.constant 0 : i32
    %c0_i32_0 = arith.constant 0 : i32
    %c0_i32_1 = arith.constant 0 : i32
    return %c0_i32, %c0_i32_0 : i32, i32
  }
  func.func @transform_2(%arg0: i32) -> (i32, i32) {
    %c0_i32 = arith.constant 0 : i32
    %c0_i32_0 = arith.constant 0 : i32
    %c0_i32_1 = arith.constant 0 : i32
    return %c0_i32, %c0_i32_0 : i32, i32
  }
  func.func @transform_3(%arg0: i32) -> (i32, i32) {
    %c0_i32 = arith.constant 0 : i32
    %c0_i32_0 = arith.constant 0 : i32
    %c0_i32_1 = arith.constant 0 : i32
    return %c0_i32, %c0_i32_0 : i32, i32
  }
  func.func @transform_4(%arg0: i32) -> (i32, i32) {
    %c0_i32 = arith.constant 0 : i32
    %c0_i32_0 = arith.constant 0 : i32
    %c0_i32_1 = arith.constant 0 : i32
    return %c0_i32, %c0_i32_0 : i32, i32
  }
  func.func @transform_5(%arg0: i32) -> (i32, i32) {
    %c0_i32 = arith.constant 0 : i32
    %c0_i32_0 = arith.constant 0 : i32
    %c0_i32_1 = arith.constant 0 : i32
    return %c0_i32, %c0_i32_0 : i32, i32
  }
  func.func @transform_6(%arg0: i32) -> i32 {
    %c0_i32 = arith.constant 0 : i32
    %c0_i32_0 = arith.constant 0 : i32
    return %c0_i32 : i32
  }
  func.func @transform_7(%arg0: i32) -> (i32, i32) {
    %c0_i32 = arith.constant 0 : i32
    %c0_i32_0 = arith.constant 0 : i32
    return %arg0, %c0_i32 : i32, i32
  }
}

</mosaic_0001>

<llo_original>
// kernel: tpu_custom_call.1
$region0: #{tpu_custom_call.1}
  #allocation0 [shape = 'u32[]', space=smem, size = 0x4, offset = 0x4, fixed_abs, tag = 'smem constant byte address 0x4 - core index']
  #allocation1 [shape = 'u32[144,128]{1,0:T(1,128)}', space=vmem, size = 0x12000, scoped, tag = 'internal scratch']
  #allocation2 [shape = 'f32[1]{0:T(128)S(6)}', space=smem, size = 0x200, scoped, tag = 'scoped memory for tpu_custom_call.1']
  %s0 = inlined_call_operand.hbm [shape: bf16[128,256], index: 0, kind: input, shape index: {}]
  %s1 = inlined_call_operand.hbm [shape: bf16[256,128], index: 1, kind: input, shape index: {}]
  %s2 = inlined_call_operand.vmem [shape: f32[1,128], index: 2, kind: input, shape index: {}]
  %s3 = inlined_call_operand.hbm [shape: bf16[128,128], index: 3, kind: input, shape index: {}]
  %s4 = inlined_call_operand.vmem [shape: f32[1,128], index: 4, kind: input, shape index: {}]
  %s5 = inlined_call_operand.vmem [shape: f32[1,128], index: 5, kind: input, shape index: {}]
  %s6 = inlined_call_operand.<no memory space> [shape: f32[1], index: 6, kind: input, shape index: {}]
  %s7 = inlined_call_operand.vmem [shape: f32[128,1], index: 7, kind: output, shape index: {}]
  %s8 = sld [smem:[#allocation0]]
  $region50: #{tpu_custom_call.1} parent=0
    _
  %s10 = ssub.s32 1, %s8
  %s11 = scalar_select 0, %s10, %s8
  %12 = sst [smem:[#allocation2]] %s6
  $region1: #{tpu_custom_call.1} parent=0
    #allocation3 [shape = 'u8[65536]{0}', space=vmem, size = 0x10000, scoped, tag = 'input window, operand 0, single buffered']
    #allocation4 [shape = 's32[1]{0}', space=sflag, size = 0x4, scoped, tag = 'scoped memory for tpu_custom_call.1']
    #allocation5 [shape = 'u8[65536]{0}', space=vmem, size = 0x10000, scoped, tag = 'input window, operand 1, single buffered']
    #allocation6 [shape = 's32[1]{0}', space=sflag, size = 0x4, scoped, tag = 'scoped memory for tpu_custom_call.1']
    #allocation7 [shape = 'u8[32768]{0}', space=vmem, size = 0x8000, scoped, tag = 'input window, operand 3, single buffered']
    %13 = vsyncpa [#allocation4], 0
    %14 = vsyncpa [#allocation6], 0
    // Predicated region
    $region2: #{tpu_custom_call.1} parent=1 // pred_check
      _
    $region3: #{tpu_custom_call.1} parent=1 // pred_check_branch
      %16 = sbr.rel (0) target = $region5
    $region4: #{tpu_custom_call.1} parent=1 // pred_region
      %s18 = ssub.s32 2048, 2048
      %19 = vsyncadd [#allocation4], %s18
      %s20 = sshll.u32 [#allocation3], 4
      %s21 = int_to_ptr.vmem [resolvable:$true] %s20
      %26 = dma.hbm_to_vmem [thread:$0]  %s0, 2048, %s21, [#allocation4], 128, 128, 8
    $region5: #{tpu_custom_call.1} parent=1 // pred_fallthru
      _
    // Predicated region
    $region6: #{tpu_custom_call.1} parent=1 // pred_check
      _
    $region7: #{tpu_custom_call.1} parent=1 // pred_check_branch
      %28 = sbr.rel (0) target = $region9
    $region8: #{tpu_custom_call.1} parent=1 // pred_region
      %s30 = ssub.s32 2048, 2048
      %31 = vsyncadd [#allocation6], %s30
      %s32 = sshll.u32 [#allocation5], 4
      %s33 = int_to_ptr.vmem [resolvable:$true] %s32
      %38 = dma.hbm_to_vmem [thread:$0]  %s1, 2048, %s33, [#allocation6], 64, 64, 4
    $region9: #{tpu_custom_call.1} parent=1 // pred_fallthru
      _
    // Predicated region
    $region10: #{tpu_custom_call.1} parent=1 // pred_check
      _
    $region11: #{tpu_custom_call.1} parent=1 // pred_check_branch
      %40 = sbr.rel (0) target = $region13
    $region12: #{tpu_custom_call.1} parent=1 // pred_region
      _
    $region13: #{tpu_custom_call.1} parent=1 // pred_fallthru
      _
    // Predicated region
    $region14: #{tpu_custom_call.1} parent=1 // pred_check
      _
    $region15: #{tpu_custom_call.1} parent=1 // pred_check_branch
      %42 = sbr.rel (0) target = $region17
    $region16: #{tpu_custom_call.1} parent=1 // pred_region
      %s44 = ssub.s32 1024, 1024
      %45 = vsyncadd [#allocation6], %s44
      %s46 = sshll.u32 [#allocation7], 4
      %s47 = int_to_ptr.vmem [resolvable:$true] %s46
      %52 = dma.hbm_to_vmem [thread:$0]  %s3, 1024, %s47, [#allocation6], 64, 64, 4
    $region17: #{tpu_custom_call.1} parent=1 // pred_fallthru
      _
    // Predicated region
    $region18: #{tpu_custom_call.1} parent=1 // pred_check
      _
    $region19: #{tpu_custom_call.1} parent=1 // pred_check_branch
      %54 = sbr.rel (0) target = $region21
    $region20: #{tpu_custom_call.1} parent=1 // pred_region
      _
    $region21: #{tpu_custom_call.1} parent=1 // pred_fallthru
      _
    // Predicated region
    $region22: #{tpu_custom_call.1} parent=1 // pred_check
      _
    $region23: #{tpu_custom_call.1} parent=1 // pred_check_branch
      %56 = sbr.rel (0) target = $region25
    $region24: #{tpu_custom_call.1} parent=1 // pred_region
      _
    $region25: #{tpu_custom_call.1} parent=1 // pred_fallthru
      _
    // Predicated region
    $region26: #{tpu_custom_call.1} parent=1 // pred_check
      _
    $region27: #{tpu_custom_call.1} parent=1 // pred_check_branch
      %58 = sbr.rel (0) target = $region29
    $region28: #{tpu_custom_call.1} parent=1 // pred_region
      _
    $region29: #{tpu_custom_call.1} parent=1 // pred_fallthru
      _
    // Predicated region
    $region30: #{tpu_custom_call.1} parent=1 // pred_check
      _
    $region31: #{tpu_custom_call.1} parent=1 // pred_check_branch
      %60 = sbr.rel (0) target = $region33
    $region32: #{tpu_custom_call.1} parent=1 // pred_region
      %61 = dma.done [#allocation4], 2048
    $region33: #{tpu_custom_call.1} parent=1 // pred_fallthru
      _
    // Predicated region
    $region34: #{tpu_custom_call.1} parent=1 // pred_check
      _
    $region35: #{tpu_custom_call.1} parent=1 // pred_check_branch
      %63 = sbr.rel (0) target = $region37
    $region36: #{tpu_custom_call.1} parent=1 // pred_region
      %64 = dma.done [#allocation6], 2048
    $region37: #{tpu_custom_call.1} parent=1 // pred_fallthru
      _
    // Predicated region
    $region38: #{tpu_custom_call.1} parent=1 // pred_check
      _
    $region39: #{tpu_custom_call.1} parent=1 // pred_check_branch
      %66 = sbr.rel (0) target = $region41
    $region40: #{tpu_custom_call.1} parent=1 // pred_region
      %67 = dma.done [#allocation6], 1024
    $region41: #{tpu_custom_call.1} parent=1 // pred_fallthru
      _
    %v69 = vld [vmem:[#allocation3] sm:$0xff]
    %v70 = vld [vmem:[#allocation3 + $0x8] sm:$0xff]
    %v71 = vld [vmem:[#allocation3 + $0x10] sm:$0xff]
    %v72 = vld [vmem:[#allocation3 + $0x18] sm:$0xff]
    %v73 = vld [vmem:[#allocation3 + $0x20] sm:$0xff]
    %v74 = vld [vmem:[#allocation3 + $0x28] sm:$0xff]
    %v75 = vld [vmem:[#allocation3 + $0x30] sm:$0xff]
    %v76 = vld [vmem:[#allocation3 + $0x38] sm:$0xff]
    %v77 = vld [vmem:[#allocation3 + $0x40] sm:$0xff]
    %v78 = vld [vmem:[#allocation3 + $0x48] sm:$0xff]
    %v79 = vld [vmem:[#allocation3 + $0x50] sm:$0xff]
    %v80 = vld [vmem:[#allocation3 + $0x58] sm:$0xff]
    %v81 = vld [vmem:[#allocation3 + $0x60] sm:$0xff]
    %v82 = vld [vmem:[#allocation3 + $0x68] sm:$0xff]
    %v83 = vld [vmem:[#allocation3 + $0x70] sm:$0xff]
    %v84 = vld [vmem:[#allocation3 + $0x78] sm:$0xff]
    %v85 = vld [vmem:[#allocation5] sm:$0xf]
    %v86 = vld [vmem:[#allocation5 + $0x4] sm:$0xf]
    %v87 = vld [vmem:[#allocation5 + $0x8] sm:$0xf]
    %v88 = vld [vmem:[#allocation5 + $0xc] sm:$0xf]
    %v89 = vld [vmem:[#allocation5 + $0x10] sm:$0xf]
    %v90 = vld [vmem:[#allocation5 + $0x14] sm:$0xf]
    %v91 = vld [vmem:[#allocation5 + $0x18] sm:$0xf]
    %v92 = vld [vmem:[#allocation5 + $0x1c] sm:$0xf]
    %v93 = vld [vmem:[#allocation5 + $0x20] sm:$0xf]
    %v94 = vld [vmem:[#allocation5 + $0x24] sm:$0xf]
    %v95 = vld [vmem:[#allocation5 + $0x28] sm:$0xf]
    %v96 = vld [vmem:[#allocation5 + $0x2c] sm:$0xf]
    %v97 = vld [vmem:[#allocation5 + $0x30] sm:$0xf]
    %v98 = vld [vmem:[#allocation5 + $0x34] sm:$0xf]
    %v99 = vld [vmem:[#allocation5 + $0x38] sm:$0xf]
    %v100 = vld [vmem:[#allocation5 + $0x3c] sm:$0xf]
    %v101 = vld [vmem:[#allocation5 + $0x40] sm:$0xf]
    %v102 = vld [vmem:[#allocation5 + $0x44] sm:$0xf]
    %v103 = vld [vmem:[#allocation5 + $0x48] sm:$0xf]
    %v104 = vld [vmem:[#allocation5 + $0x4c] sm:$0xf]
    %v105 = vld [vmem:[#allocation5 + $0x50] sm:$0xf]
    %v106 = vld [vmem:[#allocation5 + $0x54] sm:$0xf]
    %v107 = vld [vmem:[#allocation5 + $0x58] sm:$0xf]
    %v108 = vld [vmem:[#allocation5 + $0x5c] sm:$0xf]
    %v109 = vld [vmem:[#allocation5 + $0x60] sm:$0xf]
    %v110 = vld [vmem:[#allocation5 + $0x64] sm:$0xf]
    %v111 = vld [vmem:[#allocation5 + $0x68] sm:$0xf]
    %v112 = vld [vmem:[#allocation5 + $0x6c] sm:$0xf]
    %v113 = vld [vmem:[#allocation5 + $0x70] sm:$0xf]
    %v114 = vld [vmem:[#allocation5 + $0x74] sm:$0xf]
    %v115 = vld [vmem:[#allocation5 + $0x78] sm:$0xf]
    %v116 = vld [vmem:[#allocation5 + $0x7c] sm:$0xf]
    %v117 = vld [vmem:[%s2] sm:$0x1]
    %v119 = vlaneseq
    %v120 = vshrl.u32 %v119, 7
    %v121 = vsub.s32 0, %v120
    %v122 = vrot.slane %v117, %v121
    %v140 = vunpack.c.l.b16 %v69
    %v141 = vunpack.c.h.b16 %v69
    %v142 = vunpack.c.l.b16 %v70
    %v143 = vunpack.c.h.b16 %v70
    %v144 = vunpack.c.l.b16 %v71
    %v145 = vunpack.c.h.b16 %v71
    %v146 = vunpack.c.l.b16 %v72
    %v147 = vunpack.c.h.b16 %v72
    %v148 = vunpack.c.l.b16 %v73
    %v149 = vunpack.c.h.b16 %v73
    %v150 = vunpack.c.l.b16 %v74
    %v151 = vunpack.c.h.b16 %v74
    %v152 = vunpack.c.l.b16 %v75
    %v153 = vunpack.c.h.b16 %v75
    %v154 = vunpack.c.l.b16 %v76
    %v155 = vunpack.c.h.b16 %v76
    %v156 = vunpack.c.l.b16 %v77
    %v157 = vunpack.c.h.b16 %v77
    %v158 = vunpack.c.l.b16 %v78
    %v159 = vunpack.c.h.b16 %v78
    %v160 = vunpack.c.l.b16 %v79
    %v161 = vunpack.c.h.b16 %v79
    %v162 = vunpack.c.l.b16 %v80
    %v163 = vunpack.c.h.b16 %v80
    %v164 = vunpack.c.l.b16 %v81
    %v165 = vunpack.c.h.b16 %v81
    %v166 = vunpack.c.l.b16 %v82
    %v167 = vunpack.c.h.b16 %v82
    %v168 = vunpack.c.l.b16 %v83
    %v169 = vunpack.c.h.b16 %v83
    %v170 = vunpack.c.l.b16 %v84
    %v171 = vunpack.c.h.b16 %v84
    %v172 = vpack.c.b16 %v142, %v140
    %v173 = vpack.c.b16 %v143, %v141
    %v174 = vpack.c.b16 %v146, %v144
    %v175 = vpack.c.b16 %v147, %v145
    %v176 = vpack.c.b16 %v150, %v148
    %v177 = vpack.c.b16 %v151, %v149
    %v178 = vpack.c.b16 %v154, %v152
    %v179 = vpack.c.b16 %v155, %v153
    %v180 = vpack.c.b16 %v158, %v156
    %v181 = vpack.c.b16 %v159, %v157
    %v182 = vpack.c.b16 %v162, %v160
    %v183 = vpack.c.b16 %v163, %v161
    %v184 = vpack.c.b16 %v166, %v164
    %v185 = vpack.c.b16 %v167, %v165
    %v186 = vpack.c.b16 %v170, %v168
    %v187 = vpack.c.b16 %v171, %v169
    %v236 = vunpack.c.l.b16 %v85
    %v237 = vunpack.c.l.b16 %v86
    %v238 = vunpack.c.l.b16 %v87
    %v239 = vunpack.c.l.b16 %v88
    %v240 = vunpack.c.l.b16 %v89
    %v241 = vunpack.c.l.b16 %v90
    %v242 = vunpack.c.l.b16 %v91
    %v243 = vunpack.c.l.b16 %v92
    %v244 = vunpack.c.l.b16 %v93
    %v245 = vunpack.c.l.b16 %v94
    %v246 = vunpack.c.l.b16 %v95
    %v247 = vunpack.c.l.b16 %v96
    %v248 = vunpack.c.l.b16 %v97
    %v249 = vunpack.c.l.b16 %v98
    %v250 = vunpack.c.l.b16 %v99
    %v251 = vunpack.c.l.b16 %v100
    %v252 = vunpack.c.l.b16 %v101
    %v253 = vunpack.c.l.b16 %v102
    %v254 = vunpack.c.l.b16 %v103
    %v255 = vunpack.c.l.b16 %v104
    %v256 = vunpack.c.l.b16 %v105
    %v257 = vunpack.c.l.b16 %v106
    %v258 = vunpack.c.l.b16 %v107
    %v259 = vunpack.c.l.b16 %v108
    %v260 = vunpack.c.l.b16 %v109
    %v261 = vunpack.c.l.b16 %v110
    %v262 = vunpack.c.l.b16 %v111
    %v263 = vunpack.c.l.b16 %v112
    %v264 = vunpack.c.l.b16 %v113
    %v265 = vunpack.c.l.b16 %v114
    %v266 = vunpack.c.l.b16 %v115
    %v267 = vunpack.c.l.b16 %v116
    %v268 = vpack.c.b16 %v237, %v236
    %v269 = vpack.c.b16 %v239, %v238
    %v270 = vpack.c.b16 %v241, %v240
    %v271 = vpack.c.b16 %v243, %v242
    %v272 = vpack.c.b16 %v245, %v244
    %v273 = vpack.c.b16 %v247, %v246
    %v274 = vpack.c.b16 %v249, %v248
    %v275 = vpack.c.b16 %v251, %v250
    %v276 = vpack.c.b16 %v253, %v252
    %v277 = vpack.c.b16 %v255, %v254
    %v278 = vpack.c.b16 %v257, %v256
    %v279 = vpack.c.b16 %v259, %v258
    %v280 = vpack.c.b16 %v261, %v260
    %v281 = vpack.c.b16 %v263, %v262
    %v282 = vpack.c.b16 %v265, %v264
    %v283 = vpack.c.b16 %v267, %v266
    %300 = vmatprep.subr.bf16.mxu0 0
    %301 = vmatpush1.bf16.msra.mxu0 %v275
    %302 = vmatprep.subr.bf16.mxu0 0
    %303 = vmatpush1.bf16.msra.mxu0 %v274
    %304 = vmatprep.subr.bf16.mxu0 0
    %305 = vmatpush1.bf16.msra.mxu0 %v273
    %306 = vmatprep.subr.bf16.mxu0 0
    %307 = vmatpush1.bf16.msra.mxu0 %v272
    %308 = vmatprep.subr.bf16.mxu0 0
    %309 = vmatpush1.bf16.msra.mxu0 %v271
    %310 = vmatprep.subr.bf16.mxu0 0
    %311 = vmatpush1.bf16.msra.mxu0 %v270
    %312 = vmatprep.subr.bf16.mxu0 0
    %313 = vmatpush1.bf16.msra.mxu0 %v269
    %314 = vmatprep.subr.bf16.mxu0 0
    %315 = vmatpush1.bf16.msra.mxu0 %v268
    %316 = vmatprep.subr.bf16.mxu0 0
    %317 = vmatpush2.bf16.msra.mxu0 %v283
    %318 = vmatprep.subr.bf16.mxu0 0
    %319 = vmatpush2.bf16.msra.mxu0 %v282
    %320 = vmatprep.subr.bf16.mxu0 0
    %321 = vmatpush2.bf16.msra.mxu0 %v281
    %322 = vmatprep.subr.bf16.mxu0 0
    %323 = vmatpush2.bf16.msra.mxu0 %v280
    %324 = vmatprep.subr.bf16.mxu0 0
    %325 = vmatpush2.bf16.msra.mxu0 %v279
    %326 = vmatprep.subr.bf16.mxu0 0
    %327 = vmatpush2.bf16.msra.mxu0 %v278
    %328 = vmatprep.subr.bf16.mxu0 0
    %329 = vmatpush2.bf16.msra.mxu0 %v277
    %330 = vmatprep.subr.bf16.mxu0 0
    %331 = vmatpush2.bf16.msra.mxu0 %v276
    %332 = vmatprep.mubr.bf16.mxu0 %v173
    %333 = vmatmul.mubr.bf16.gmra.mxu0 %v172
    %v334 = vpop.f32.mrf.mxu0
    %v335 = vadd.f32 %v122, %v334
    %v336 = vpop.f32.mrf.mxu0
    %v337 = vpop.f32.mrf.mxu0
    %v338 = vadd.f32 %v122, %v337
    %v339 = vpop.f32.mrf.mxu0
    %340 = vmatprep.mubr.bf16.mxu0 %v175
    %341 = vmatmul.mubr.bf16.gmra.mxu0 %v174
    %v342 = vpop.f32.mrf.mxu0
    %v343 = vadd.f32 %v122, %v342
    %v344 = vpop.f32.mrf.mxu0
    %v345 = vpop.f32.mrf.mxu0
    %v346 = vadd.f32 %v122, %v345
    %v347 = vpop.f32.mrf.mxu0
    %348 = vmatprep.mubr.bf16.mxu0 %v177
    %349 = vmatmul.mubr.bf16.gmra.mxu0 %v176
    %v350 = vpop.f32.mrf.mxu0
    %v351 = vadd.f32 %v122, %v350
    %v352 = vpop.f32.mrf.mxu0
    %v353 = vpop.f32.mrf.mxu0
    %v354 = vadd.f32 %v122, %v353
    %v355 = vpop.f32.mrf.mxu0
    %356 = vmatprep.mubr.bf16.mxu0 %v179
    %357 = vmatmul.mubr.bf16.gmra.mxu0 %v178
    %v358 = vpop.f32.mrf.mxu0
    %v359 = vadd.f32 %v122, %v358
    %v360 = vpop.f32.mrf.mxu0
    %v361 = vpop.f32.mrf.mxu0
    %v362 = vadd.f32 %v122, %v361
    %v363 = vpop.f32.mrf.mxu0
    %364 = vmatprep.mubr.bf16.mxu0 %v181
    %365 = vmatmul.mubr.bf16.gmra.mxu0 %v180
    %v366 = vpop.f32.mrf.mxu0
    %v367 = vadd.f32 %v122, %v366
    %v368 = vpop.f32.mrf.mxu0
    %v369 = vpop.f32.mrf.mxu0
    %v370 = vadd.f32 %v122, %v369
    %v371 = vpop.f32.mrf.mxu0
    %372 = vmatprep.mubr.bf16.mxu0 %v183
    %373 = vmatmul.mubr.bf16.gmra.mxu0 %v182
    %v374 = vpop.f32.mrf.mxu0
    %v375 = vadd.f32 %v122, %v374
    %v376 = vpop.f32.mrf.mxu0
    %v377 = vpop.f32.mrf.mxu0
    %v378 = vadd.f32 %v122, %v377
    %v379 = vpop.f32.mrf.mxu0
    %380 = vmatprep.mubr.bf16.mxu0 %v185
    %381 = vmatmul.mubr.bf16.gmra.mxu0 %v184
    %v382 = vpop.f32.mrf.mxu0
    %v383 = vadd.f32 %v122, %v382
    %v384 = vpop.f32.mrf.mxu0
    %v385 = vpop.f32.mrf.mxu0
    %v386 = vadd.f32 %v122, %v385
    %v387 = vpop.f32.mrf.mxu0
    %388 = vmatprep.mubr.bf16.mxu0 %v187
    %389 = vmatmul.mubr.bf16.gmra.mxu0 %v186
    %v390 = vpop.f32.mrf.mxu0
    %v391 = vadd.f32 %v122, %v390
    %v392 = vpop.f32.mrf.mxu0
    %v393 = vpop.f32.mrf.mxu0
    %v394 = vadd.f32 %v122, %v393
    %v395 = vpop.f32.mrf.mxu0
    %396 = vdwg.mxu0
    %v397 = vmax.f32 %v335, 0.0
    %v398 = vmax.f32 %v338, 0.0
    %v399 = vmax.f32 %v343, 0.0
    %v400 = vmax.f32 %v346, 0.0
    %v401 = vmax.f32 %v351, 0.0
    %v402 = vmax.f32 %v354, 0.0
    %v403 = vmax.f32 %v359, 0.0
    %v404 = vmax.f32 %v362, 0.0
    %v405 = vmax.f32 %v367, 0.0
    %v406 = vmax.f32 %v370, 0.0
    %v407 = vmax.f32 %v375, 0.0
    %v408 = vmax.f32 %v378, 0.0
    %v409 = vmax.f32 %v383, 0.0
    %v410 = vmax.f32 %v386, 0.0
    %v411 = vmax.f32 %v391, 0.0
    %v412 = vmax.f32 %v394, 0.0
    %v413 = vld [vmem:[#allocation7] sm:$0xf]
    %v414 = vld [vmem:[#allocation7 + $0x4] sm:$0xf]
    %v415 = vld [vmem:[#allocation7 + $0x8] sm:$0xf]
    %v416 = vld [vmem:[#allocation7 + $0xc] sm:$0xf]
    %v417 = vld [vmem:[#allocation7 + $0x10] sm:$0xf]
    %v418 = vld [vmem:[#allocation7 + $0x14] sm:$0xf]
    %v419 = vld [vmem:[#allocation7 + $0x18] sm:$0xf]
    %v420 = vld [vmem:[#allocation7 + $0x1c] sm:$0xf]
    %v421 = vld [vmem:[#allocation7 + $0x20] sm:$0xf]
    %v422 = vld [vmem:[#allocation7 + $0x24] sm:$0xf]
    %v423 = vld [vmem:[#allocation7 + $0x28] sm:$0xf]
    %v424 = vld [vmem:[#allocation7 + $0x2c] sm:$0xf]
    %v425 = vld [vmem:[#allocation7 + $0x30] sm:$0xf]
    %v426 = vld [vmem:[#allocation7 + $0x34] sm:$0xf]
    %v427 = vld [vmem:[#allocation7 + $0x38] sm:$0xf]
    %v428 = vld [vmem:[#allocation7 + $0x3c] sm:$0xf]
    %v429 = vld [vmem:[%s4] sm:$0x1]
    %v431 = vlaneseq
    %v432 = vshrl.u32 %v431, 7
    %v433 = vsub.s32 0, %v432
    %v434 = vrot.slane %v429, %v433
    %v436 = vpack.c.bf16 %v398, %v397
    %v437 = vpack.c.bf16 %v400, %v399
    %v438 = vpack.c.bf16 %v402, %v401
    %v439 = vpack.c.bf16 %v404, %v403
    %v440 = vpack.c.bf16 %v406, %v405
    %v441 = vpack.c.bf16 %v408, %v407
    %v442 = vpack.c.bf16 %v410, %v409
    %v443 = vpack.c.bf16 %v412, %v411
    %v460 = vunpack.c.l.b16 %v413
    %v461 = vunpack.c.l.b16 %v414
    %v462 = vunpack.c.l.b16 %v415
    %v463 = vunpack.c.l.b16 %v416
    %v464 = vunpack.c.l.b16 %v417
    %v465 = vunpack.c.l.b16 %v418
    %v466 = vunpack.c.l.b16 %v419
    %v467 = vunpack.c.l.b16 %v420
    %v468 = vunpack.c.l.b16 %v421
    %v469 = vunpack.c.l.b16 %v422
    %v470 = vunpack.c.l.b16 %v423
    %v471 = vunpack.c.l.b16 %v424
    %v472 = vunpack.c.l.b16 %v425
    %v473 = vunpack.c.l.b16 %v426
    %v474 = vunpack.c.l.b16 %v427
    %v475 = vunpack.c.l.b16 %v428
    %v476 = vpack.c.b16 %v461, %v460
    %v477 = vpack.c.b16 %v463, %v462
    %v478 = vpack.c.b16 %v465, %v464
    %v479 = vpack.c.b16 %v467, %v466
    %v480 = vpack.c.b16 %v469, %v468
    %v481 = vpack.c.b16 %v471, %v470
    %v482 = vpack.c.b16 %v473, %v472
    %v483 = vpack.c.b16 %v475, %v474
    %492 = vmatprep.subr.bf16.mxu0 0
    %493 = vmatpush1.bf16.msra.mxu0 %v483
    %494 = vmatprep.subr.bf16.mxu0 0
    %495 = vmatpush1.bf16.msra.mxu0 %v482
    %496 = vmatprep.subr.bf16.mxu0 0
    %497 = vmatpush1.bf16.msra.mxu0 %v481
    %498 = vmatprep.subr.bf16.mxu0 0
    %499 = vmatpush1.bf16.msra.mxu0 %v480
    %500 = vmatprep.subr.bf16.mxu0 0
    %501 = vmatpush1.bf16.msra.mxu0 %v479
    %502 = vmatprep.subr.bf16.mxu0 0
    %503 = vmatpush1.bf16.msra.mxu0 %v478
    %504 = vmatprep.subr.bf16.mxu0 0
    %505 = vmatpush1.bf16.msra.mxu0 %v477
    %506 = vmatprep.subr.bf16.mxu0 0
    %507 = vmatpush1.bf16.msra.mxu0 %v476
    %508 = vmatprep.subr.bf16.mxu0 0
    %509 = vmatpush2.bf16.msra.mxu0 0
    %510 = vmatprep.subr.bf16.mxu0 0
    %511 = vmatpush2.bf16.msra.mxu0 0
    %512 = vmatprep.subr.bf16.mxu0 0
    %513 = vmatpush2.bf16.msra.mxu0 0
    %514 = vmatprep.subr.bf16.mxu0 0
    %515 = vmatpush2.bf16.msra.mxu0 0
    %516 = vmatprep.subr.bf16.mxu0 0
    %517 = vmatpush2.bf16.msra.mxu0 0
    %518 = vmatprep.subr.bf16.mxu0 0
    %519 = vmatpush2.bf16.msra.mxu0 0
    %520 = vmatprep.subr.bf16.mxu0 0
    %521 = vmatpush2.bf16.msra.mxu0 0
    %522 = vmatprep.subr.bf16.mxu0 0
    %523 = vmatpush2.bf16.msra.mxu0 0
    %524 = vmatprep.mubr.bf16.mxu0 0
    %525 = vmatmul.mubr.bf16.gmra.mxu0 %v436
    %v526 = vpop.f32.mrf.mxu0
    %v527 = vadd.f32 %v434, %v526
    %v528 = vpop.f32.mrf.mxu0
    %v529 = vpop.f32.mrf.mxu0
    %v530 = vadd.f32 %v434, %v529
    %v531 = vpop.f32.mrf.mxu0
    %532 = vmatprep.mubr.bf16.mxu0 0
    %533 = vmatmul.mubr.bf16.gmra.mxu0 %v437
    %v534 = vpop.f32.mrf.mxu0
    %v535 = vadd.f32 %v434, %v534
    %v536 = vpop.f32.mrf.mxu0
    %v537 = vpop.f32.mrf.mxu0
    %v538 = vadd.f32 %v434, %v537
    %v539 = vpop.f32.mrf.mxu0
    %540 = vmatprep.mubr.bf16.mxu0 0
    %541 = vmatmul.mubr.bf16.gmra.mxu0 %v438
    %v542 = vpop.f32.mrf.mxu0
    %v543 = vadd.f32 %v434, %v542
    %v544 = vpop.f32.mrf.mxu0
    %v545 = vpop.f32.mrf.mxu0
    %v546 = vadd.f32 %v434, %v545
    %v547 = vpop.f32.mrf.mxu0
    %548 = vmatprep.mubr.bf16.mxu0 0
    %549 = vmatmul.mubr.bf16.gmra.mxu0 %v439
    %v550 = vpop.f32.mrf.mxu0
    %v551 = vadd.f32 %v434, %v550
    %v552 = vpop.f32.mrf.mxu0
    %v553 = vpop.f32.mrf.mxu0
    %v554 = vadd.f32 %v434, %v553
    %v555 = vpop.f32.mrf.mxu0
    %556 = vmatprep.mubr.bf16.mxu0 0
    %557 = vmatmul.mubr.bf16.gmra.mxu0 %v440
    %v558 = vpop.f32.mrf.mxu0
    %v559 = vadd.f32 %v434, %v558
    %v560 = vpop.f32.mrf.mxu0
    %v561 = vpop.f32.mrf.mxu0
    %v562 = vadd.f32 %v434, %v561
    %v563 = vpop.f32.mrf.mxu0
    %564 = vmatprep.mubr.bf16.mxu0 0
    %565 = vmatmul.mubr.bf16.gmra.mxu0 %v441
    %v566 = vpop.f32.mrf.mxu0
    %v567 = vadd.f32 %v434, %v566
    %v568 = vpop.f32.mrf.mxu0
    %v569 = vpop.f32.mrf.mxu0
    %v570 = vadd.f32 %v434, %v569
    %v571 = vpop.f32.mrf.mxu0
    %572 = vmatprep.mubr.bf16.mxu0 0
    %573 = vmatmul.mubr.bf16.gmra.mxu0 %v442
    %v574 = vpop.f32.mrf.mxu0
    %v575 = vadd.f32 %v434, %v574
    %v576 = vpop.f32.mrf.mxu0
    %v577 = vpop.f32.mrf.mxu0
    %v578 = vadd.f32 %v434, %v577
    %v579 = vpop.f32.mrf.mxu0
    %580 = vmatprep.mubr.bf16.mxu0 0
    %581 = vmatmul.mubr.bf16.gmra.mxu0 %v443
    %v582 = vpop.f32.mrf.mxu0
    %v583 = vadd.f32 %v434, %v582
    %v584 = vpop.f32.mrf.mxu0
    %v585 = vpop.f32.mrf.mxu0
    %v586 = vadd.f32 %v434, %v585
    %v587 = vpop.f32.mrf.mxu0
    %588 = vdwg.mxu0
    %v589 = vmax.f32 %v527, 0.0
    %v590 = vmax.f32 %v530, 0.0
    %v591 = vmax.f32 %v535, 0.0
    %v592 = vmax.f32 %v538, 0.0
    %v593 = vmax.f32 %v543, 0.0
    %v594 = vmax.f32 %v546, 0.0
    %v595 = vmax.f32 %v551, 0.0
    %v596 = vmax.f32 %v554, 0.0
    %v597 = vmax.f32 %v559, 0.0
    %v598 = vmax.f32 %v562, 0.0
    %v599 = vmax.f32 %v567, 0.0
    %v600 = vmax.f32 %v570, 0.0
    %v601 = vmax.f32 %v575, 0.0
    %v602 = vmax.f32 %v578, 0.0
    %v603 = vmax.f32 %v583, 0.0
    %v604 = vmax.f32 %v586, 0.0
    %v605 = vpack.c.bf16 %v590, %v589
    %v606 = vpack.c.bf16 %v592, %v591
    %v607 = vpack.c.bf16 %v594, %v593
    %v608 = vpack.c.bf16 %v596, %v595
    %v609 = vpack.c.bf16 %v598, %v597
    %v610 = vpack.c.bf16 %v600, %v599
    %v611 = vpack.c.bf16 %v602, %v601
    %v612 = vpack.c.bf16 %v604, %v603
    %613 = vmatprep.subr.bf16.mxu0 0
    %614 = vmatpush1.bf16.msra.mxu0 %v483
    %615 = vmatprep.subr.bf16.mxu0 0
    %616 = vmatpush1.bf16.msra.mxu0 %v482
    %617 = vmatprep.subr.bf16.mxu0 0
    %618 = vmatpush1.bf16.msra.mxu0 %v481
    %619 = vmatprep.subr.bf16.mxu0 0
    %620 = vmatpush1.bf16.msra.mxu0 %v480
    %621 = vmatprep.subr.bf16.mxu0 0
    %622 = vmatpush1.bf16.msra.mxu0 %v479
    %623 = vmatprep.subr.bf16.mxu0 0
    %624 = vmatpush1.bf16.msra.mxu0 %v478
    %625 = vmatprep.subr.bf16.mxu0 0
    %626 = vmatpush1.bf16.msra.mxu0 %v477
    %627 = vmatprep.subr.bf16.mxu0 0
    %628 = vmatpush1.bf16.msra.mxu0 %v476
    %629 = vmatprep.subr.bf16.mxu0 0
    %630 = vmatpush2.bf16.msra.mxu0 0
    %631 = vmatprep.subr.bf16.mxu0 0
    %632 = vmatpush2.bf16.msra.mxu0 0
    %633 = vmatprep.subr.bf16.mxu0 0
    %634 = vmatpush2.bf16.msra.mxu0 0
    %635 = vmatprep.subr.bf16.mxu0 0
    %636 = vmatpush2.bf16.msra.mxu0 0
    %637 = vmatprep.subr.bf16.mxu0 0
    %638 = vmatpush2.bf16.msra.mxu0 0
    %639 = vmatprep.subr.bf16.mxu0 0
    %640 = vmatpush2.bf16.msra.mxu0 0
    %641 = vmatprep.subr.bf16.mxu0 0
    %642 = vmatpush2.bf16.msra.mxu0 0
    %643 = vmatprep.subr.bf16.mxu0 0
    %644 = vmatpush2.bf16.msra.mxu0 0
    %645 = vmatprep.mubr.bf16.mxu0 0
    %646 = vmatmul.mubr.bf16.gmra.mxu0 %v605
    %v647 = vpop.f32.mrf.mxu0
    %v648 = vadd.f32 %v434, %v647
    %v649 = vpop.f32.mrf.mxu0
    %v650 = vpop.f32.mrf.mxu0
    %v651 = vadd.f32 %v434, %v650
    %v652 = vpop.f32.mrf.mxu0
    %653 = vmatprep.mubr.bf16.mxu0 0
    %654 = vmatmul.mubr.bf16.gmra.mxu0 %v606
    %v655 = vpop.f32.mrf.mxu0
    %v656 = vadd.f32 %v434, %v655
    %v657 = vpop.f32.mrf.mxu0
    %v658 = vpop.f32.mrf.mxu0
    %v659 = vadd.f32 %v434, %v658
    %v660 = vpop.f32.mrf.mxu0
    %661 = vmatprep.mubr.bf16.mxu0 0
    %662 = vmatmul.mubr.bf16.gmra.mxu0 %v607
    %v663 = vpop.f32.mrf.mxu0
    %v664 = vadd.f32 %v434, %v663
    %v665 = vpop.f32.mrf.mxu0
    %v666 = vpop.f32.mrf.mxu0
    %v667 = vadd.f32 %v434, %v666
    %v668 = vpop.f32.mrf.mxu0
    %669 = vmatprep.mubr.bf16.mxu0 0
    %670 = vmatmul.mubr.bf16.gmra.mxu0 %v608
    %v671 = vpop.f32.mrf.mxu0
    %v672 = vadd.f32 %v434, %v671
    %v673 = vpop.f32.mrf.mxu0
    %v674 = vpop.f32.mrf.mxu0
    %v675 = vadd.f32 %v434, %v674
    %v676 = vpop.f32.mrf.mxu0
    %677 = vmatprep.mubr.bf16.mxu0 0
    %678 = vmatmul.mubr.bf16.gmra.mxu0 %v609
    %v679 = vpop.f32.mrf.mxu0
    %v680 = vadd.f32 %v434, %v679
    %v681 = vpop.f32.mrf.mxu0
    %v682 = vpop.f32.mrf.mxu0
    %v683 = vadd.f32 %v434, %v682
    %v684 = vpop.f32.mrf.mxu0
    %685 = vmatprep.mubr.bf16.mxu0 0
    %686 = vmatmul.mubr.bf16.gmra.mxu0 %v610
    %v687 = vpop.f32.mrf.mxu0
    %v688 = vadd.f32 %v434, %v687
    %v689 = vpop.f32.mrf.mxu0
    %v690 = vpop.f32.mrf.mxu0
    %v691 = vadd.f32 %v434, %v690
    %v692 = vpop.f32.mrf.mxu0
    %693 = vmatprep.mubr.bf16.mxu0 0
    %694 = vmatmul.mubr.bf16.gmra.mxu0 %v611
    %v695 = vpop.f32.mrf.mxu0
    %v696 = vadd.f32 %v434, %v695
    %v697 = vpop.f32.mrf.mxu0
    %v698 = vpop.f32.mrf.mxu0
    %v699 = vadd.f32 %v434, %v698
    %v700 = vpop.f32.mrf.mxu0
    %701 = vmatprep.mubr.bf16.mxu0 0
    %702 = vmatmul.mubr.bf16.gmra.mxu0 %v612
    %v703 = vpop.f32.mrf.mxu0
    %v704 = vadd.f32 %v434, %v703
    %v705 = vpop.f32.mrf.mxu0
    %v706 = vpop.f32.mrf.mxu0
    %v707 = vadd.f32 %v434, %v706
    %v708 = vpop.f32.mrf.mxu0
    %709 = vdwg.mxu0
    %v710 = vmax.f32 %v648, 0.0
    %v711 = vmax.f32 %v651, 0.0
    %v712 = vmax.f32 %v656, 0.0
    %v713 = vmax.f32 %v659, 0.0
    %v714 = vmax.f32 %v664, 0.0
    %v715 = vmax.f32 %v667, 0.0
    %v716 = vmax.f32 %v672, 0.0
    %v717 = vmax.f32 %v675, 0.0
    %v718 = vmax.f32 %v680, 0.0
    %v719 = vmax.f32 %v683, 0.0
    %v720 = vmax.f32 %v688, 0.0
    %v721 = vmax.f32 %v691, 0.0
    %v722 = vmax.f32 %v696, 0.0
    %v723 = vmax.f32 %v699, 0.0
    %v724 = vmax.f32 %v704, 0.0
    %v725 = vmax.f32 %v707, 0.0
    %v726 = vpack.c.bf16 %v711, %v710
    %v727 = vpack.c.bf16 %v713, %v712
    %v728 = vpack.c.bf16 %v715, %v714
    %v729 = vpack.c.bf16 %v717, %v716
    %v730 = vpack.c.bf16 %v719, %v718
    %v731 = vpack.c.bf16 %v721, %v720
    %v732 = vpack.c.bf16 %v723, %v722
    %v733 = vpack.c.bf16 %v725, %v724
    %734 = vmatprep.subr.bf16.mxu0 0
    %735 = vmatpush1.bf16.msra.mxu0 %v483
    %736 = vmatprep.subr.bf16.mxu0 0
    %737 = vmatpush1.bf16.msra.mxu0 %v482
    %738 = vmatprep.subr.bf16.mxu0 0
    %739 = vmatpush1.bf16.msra.mxu0 %v481
    %740 = vmatprep.subr.bf16.mxu0 0
    %741 = vmatpush1.bf16.msra.mxu0 %v480
    %742 = vmatprep.subr.bf16.mxu0 0
    %743 = vmatpush1.bf16.msra.mxu0 %v479
    %744 = vmatprep.subr.bf16.mxu0 0
    %745 = vmatpush1.bf16.msra.mxu0 %v478
    %746 = vmatprep.subr.bf16.mxu0 0
    %747 = vmatpush1.bf16.msra.mxu0 %v477
    %748 = vmatprep.subr.bf16.mxu0 0
    %749 = vmatpush1.bf16.msra.mxu0 %v476
    %750 = vmatprep.subr.bf16.mxu0 0
    %751 = vmatpush2.bf16.msra.mxu0 0
    %752 = vmatprep.subr.bf16.mxu0 0
    %753 = vmatpush2.bf16.msra.mxu0 0
    %754 = vmatprep.subr.bf16.mxu0 0
    %755 = vmatpush2.bf16.msra.mxu0 0
    %756 = vmatprep.subr.bf16.mxu0 0
    %757 = vmatpush2.bf16.msra.mxu0 0
    %758 = vmatprep.subr.bf16.mxu0 0
    %759 = vmatpush2.bf16.msra.mxu0 0
    %760 = vmatprep.subr.bf16.mxu0 0
    %761 = vmatpush2.bf16.msra.mxu0 0
    %762 = vmatprep.subr.bf16.mxu0 0
    %763 = vmatpush2.bf16.msra.mxu0 0
    %764 = vmatprep.subr.bf16.mxu0 0
    %765 = vmatpush2.bf16.msra.mxu0 0
    %766 = vmatprep.mubr.bf16.mxu0 0
    %767 = vmatmul.mubr.bf16.gmra.mxu0 %v726
    %v768 = vpop.f32.mrf.mxu0
    %v769 = vadd.f32 %v434, %v768
    %v770 = vpop.f32.mrf.mxu0
    %v771 = vpop.f32.mrf.mxu0
    %v772 = vadd.f32 %v434, %v771
    %v773 = vpop.f32.mrf.mxu0
    %774 = vmatprep.mubr.bf16.mxu0 0
    %775 = vmatmul.mubr.bf16.gmra.mxu0 %v727
    %v776 = vpop.f32.mrf.mxu0
    %v777 = vadd.f32 %v434, %v776
    %v778 = vpop.f32.mrf.mxu0
    %v779 = vpop.f32.mrf.mxu0
    %v780 = vadd.f32 %v434, %v779
    %v781 = vpop.f32.mrf.mxu0
    %782 = vmatprep.mubr.bf16.mxu0 0
    %783 = vmatmul.mubr.bf16.gmra.mxu0 %v728
    %v784 = vpop.f32.mrf.mxu0
    %v785 = vadd.f32 %v434, %v784
    %v786 = vpop.f32.mrf.mxu0
    %v787 = vpop.f32.mrf.mxu0
    %v788 = vadd.f32 %v434, %v787
    %v789 = vpop.f32.mrf.mxu0
    %790 = vmatprep.mubr.bf16.mxu0 0
    %791 = vmatmul.mubr.bf16.gmra.mxu0 %v729
    %v792 = vpop.f32.mrf.mxu0
    %v793 = vadd.f32 %v434, %v792
    %v794 = vpop.f32.mrf.mxu0
    %v795 = vpop.f32.mrf.mxu0
    %v796 = vadd.f32 %v434, %v795
    %v797 = vpop.f32.mrf.mxu0
    %798 = vmatprep.mubr.bf16.mxu0 0
    %799 = vmatmul.mubr.bf16.gmra.mxu0 %v730
    %v800 = vpop.f32.mrf.mxu0
    %v801 = vadd.f32 %v434, %v800
    %v802 = vpop.f32.mrf.mxu0
    %v803 = vpop.f32.mrf.mxu0
    %v804 = vadd.f32 %v434, %v803
    %v805 = vpop.f32.mrf.mxu0
    %806 = vmatprep.mubr.bf16.mxu0 0
    %807 = vmatmul.mubr.bf16.gmra.mxu0 %v731
    %v808 = vpop.f32.mrf.mxu0
    %v809 = vadd.f32 %v434, %v808
    %v810 = vpop.f32.mrf.mxu0
    %v811 = vpop.f32.mrf.mxu0
    %v812 = vadd.f32 %v434, %v811
    %v813 = vpop.f32.mrf.mxu0
    %814 = vmatprep.mubr.bf16.mxu0 0
    %815 = vmatmul.mubr.bf16.gmra.mxu0 %v732
    %v816 = vpop.f32.mrf.mxu0
    %v817 = vadd.f32 %v434, %v816
    %v818 = vpop.f32.mrf.mxu0
    %v819 = vpop.f32.mrf.mxu0
    %v820 = vadd.f32 %v434, %v819
    %v821 = vpop.f32.mrf.mxu0
    %822 = vmatprep.mubr.bf16.mxu0 0
    %823 = vmatmul.mubr.bf16.gmra.mxu0 %v733
    %v824 = vpop.f32.mrf.mxu0
    %v825 = vadd.f32 %v434, %v824
    %v826 = vpop.f32.mrf.mxu0
    %v827 = vpop.f32.mrf.mxu0
    %v828 = vadd.f32 %v434, %v827
    %v829 = vpop.f32.mrf.mxu0
    %830 = vdwg.mxu0
    %v831 = vmax.f32 %v769, 0.0
    %v832 = vmax.f32 %v772, 0.0
    %v833 = vmax.f32 %v777, 0.0
    %v834 = vmax.f32 %v780, 0.0
    %v835 = vmax.f32 %v785, 0.0
    %v836 = vmax.f32 %v788, 0.0
    %v837 = vmax.f32 %v793, 0.0
    %v838 = vmax.f32 %v796, 0.0
    %v839 = vmax.f32 %v801, 0.0
    %v840 = vmax.f32 %v804, 0.0
    %v841 = vmax.f32 %v809, 0.0
    %v842 = vmax.f32 %v812, 0.0
    %v843 = vmax.f32 %v817, 0.0
    %v844 = vmax.f32 %v820, 0.0
    %v845 = vmax.f32 %v825, 0.0
    %v846 = vmax.f32 %v828, 0.0
    %v847 = vld [vmem:[%s5] sm:$0x1]
    %v849 = vlaneseq
    %v850 = vshrl.u32 %v849, 7
    %v851 = vsub.s32 0, %v850
    %v852 = vrot.slane %v847, %v851
    %v854 = vmul.f32 %v831, %v852
    %v855 = vmul.f32 %v832, %v852
    %v856 = vmul.f32 %v833, %v852
    %v857 = vmul.f32 %v834, %v852
    %v858 = vmul.f32 %v835, %v852
    %v859 = vmul.f32 %v836, %v852
    %v860 = vmul.f32 %v837, %v852
    %v861 = vmul.f32 %v838, %v852
    %v862 = vmul.f32 %v839, %v852
    %v863 = vmul.f32 %v840, %v852
    %v864 = vmul.f32 %v841, %v852
    %v865 = vmul.f32 %v842, %v852
    %v866 = vmul.f32 %v843, %v852
    %v867 = vmul.f32 %v844, %v852
    %v868 = vmul.f32 %v845, %v852
    %v869 = vmul.f32 %v846, %v852
    %870 = vadd.xlane.f32.xlu0 %v854
    %v871 = vpop.xlane.xlu0 %870
    %872 = vadd.xlane.f32.xlu0 %v855
    %v873 = vpop.xlane.xlu0 %872
    %874 = vadd.xlane.f32.xlu0 %v856
    %v875 = vpop.xlane.xlu0 %874
    %876 = vadd.xlane.f32.xlu0 %v857
    %v877 = vpop.xlane.xlu0 %876
    %878 = vadd.xlane.f32.xlu0 %v858
    %v879 = vpop.xlane.xlu0 %878
    %880 = vadd.xlane.f32.xlu0 %v859
    %v881 = vpop.xlane.xlu0 %880
    %882 = vadd.xlane.f32.xlu0 %v860
    %v883 = vpop.xlane.xlu0 %882
    %884 = vadd.xlane.f32.xlu0 %v861
    %v885 = vpop.xlane.xlu0 %884
    %886 = vadd.xlane.f32.xlu0 %v862
    %v887 = vpop.xlane.xlu0 %886
    %888 = vadd.xlane.f32.xlu0 %v863
    %v889 = vpop.xlane.xlu0 %888
    %890 = vadd.xlane.f32.xlu0 %v864
    %v891 = vpop.xlane.xlu0 %890
    %892 = vadd.xlane.f32.xlu0 %v865
    %v893 = vpop.xlane.xlu0 %892
    %894 = vadd.xlane.f32.xlu0 %v866
    %v895 = vpop.xlane.xlu0 %894
    %896 = vadd.xlane.f32.xlu0 %v867
    %v897 = vpop.xlane.xlu0 %896
    %898 = vadd.xlane.f32.xlu0 %v868
    %v899 = vpop.xlane.xlu0 %898
    %900 = vadd.xlane.f32.xlu0 %v869
    %v901 = vpop.xlane.xlu0 %900
    %s902 = sld [smem:[#allocation2]]
    %v903 = vstv %s902
    %v904 = vadd.f32 %v871, %v903
    %v905 = vadd.f32 %v873, %v903
    %v906 = vadd.f32 %v875, %v903
    %v907 = vadd.f32 %v877, %v903
    %v908 = vadd.f32 %v879, %v903
    %v909 = vadd.f32 %v881, %v903
    %v910 = vadd.f32 %v883, %v903
    %v911 = vadd.f32 %v885, %v903
    %v912 = vadd.f32 %v887, %v903
    %v913 = vadd.f32 %v889, %v903
    %v914 = vadd.f32 %v891, %v903
    %v915 = vadd.f32 %v893, %v903
    %v916 = vadd.f32 %v895, %v903
    %v917 = vadd.f32 %v897, %v903
    %v918 = vadd.f32 %v899, %v903
    %v919 = vadd.f32 %v901, %v903
    %vm920 = vcmask 7168
    %921 = vst.msk [vmem:[%s7] sm:$0xff] %vm920, %v904
    %922 = vst.msk [vmem:[%s7 + $0x8] sm:$0xff] %vm920, %v905
    %923 = vst.msk [vmem:[%s7 + $0x10] sm:$0xff] %vm920, %v906
    %924 = vst.msk [vmem:[%s7 + $0x18] sm:$0xff] %vm920, %v907
    %925 = vst.msk [vmem:[%s7 + $0x20] sm:$0xff] %vm920, %v908
    %926 = vst.msk [vmem:[%s7 + $0x28] sm:$0xff] %vm920, %v909
    %927 = vst.msk [vmem:[%s7 + $0x30] sm:$0xff] %vm920, %v910
    %928 = vst.msk [vmem:[%s7 + $0x38] sm:$0xff] %vm920, %v911
    %929 = vst.msk [vmem:[%s7 + $0x40] sm:$0xff] %vm920, %v912
    %930 = vst.msk [vmem:[%s7 + $0x48] sm:$0xff] %vm920, %v913
    %931 = vst.msk [vmem:[%s7 + $0x50] sm:$0xff] %vm920, %v914
    %932 = vst.msk [vmem:[%s7 + $0x58] sm:$0xff] %vm920, %v915
    %933 = vst.msk [vmem:[%s7 + $0x60] sm:$0xff] %vm920, %v916
    %934 = vst.msk [vmem:[%s7 + $0x68] sm:$0xff] %vm920, %v917
    %935 = vst.msk [vmem:[%s7 + $0x70] sm:$0xff] %vm920, %v918
    %936 = vst.msk [vmem:[%s7 + $0x78] sm:$0xff] %vm920, %v919
    // Predicated region
    $region42: #{tpu_custom_call.1} parent=1 // pred_check
      _
    $region43: #{tpu_custom_call.1} parent=1 // pred_check_branch
      %938 = sbr.rel (0) target = $region45
    $region44: #{tpu_custom_call.1} parent=1 // pred_region
      _
    $region45: #{tpu_custom_call.1} parent=1 // pred_fallthru
      _
    // Predicated region
    $region46: #{tpu_custom_call.1} parent=1 // pred_check
      _
    $region47: #{tpu_custom_call.1} parent=1 // pred_check_branch
      %940 = sbr.rel (0) target = $region49
    $region48: #{tpu_custom_call.1} parent=1 // pred_region
      _
    $region49: #{tpu_custom_call.1} parent=1 // pred_fallthru
      _
    %941 = vsyncpa [#allocation4], 1
    %942 = vsyncpa [#allocation6], 1

</llo_original>
